<compile_context>
chip_gen: v7x
topology: tpu7x:2x2x1
jax: 0.10.0
libtpu: 0.0.40
codegen_flags: <defaults>
</compile_context>

<pallas_src>
import jax
import jax.numpy as jnp
from jax import lax
from jax.experimental import pallas as pl
from jax.experimental.pallas import tpu as pltpu

_IN, _H1, _H2, _OUT = 8, 6, 4, 1
_LANE = 128
_SUB = 8          # sublanes per register-resident chunk (one f32 vreg per feature row)


def _sigmoid(x):
    # One EUP op per element; numerically identical to 1/(1+exp(-x)) in f32.
    return jnp.tanh(x * 0.5) * 0.5 + 0.5


def _mlp_kernel(w1_ref, b1_ref, w2_ref, b2_ref, w3_ref, b3_ref, x_ref, o_ref):
    """Fused 8->6->4->1 sigmoid MLP on one batch tile.

    x_ref : (8, R, 128) VMEM -- feature k at x_ref[k], batch lane-dense.
    w*_ref: (out, in) SMEM, b*_ref: (out,) SMEM (PyTorch Linear layout).
    o_ref : (R, 128) VMEM   -- lane-dense output slab.
    """
    n_rows = x_ref.shape[1]          # R = TB // 128 (static, multiple of _SUB)
    n_chunks = n_rows // _SUB

    def dense_sigmoid(rows_in, w_ref, b_ref, out_dim, in_dim):
        # Tiny contraction: unrolled VPU scalar-broadcast multiply-adds instead
        # of a near-empty MXU pass.
        outs = []
        for j in range(out_dim):
            acc = rows_in[0] * w_ref[j, 0]
            for k in range(1, in_dim):
                acc = acc + rows_in[k] * w_ref[j, k]
            outs.append(_sigmoid(acc + b_ref[j]))
        return outs

    def chunk_body(c, carry):
        # One (8 sublane x 128 lane) vreg per feature row; whole chain stays in
        # registers so large tiles never spill intermediates to VMEM.
        r0 = pl.multiple_of(c * _SUB, _SUB)
        xs = [x_ref[k, pl.ds(r0, _SUB), :] for k in range(_IN)]   # 8 x (SUB,128)
        h1 = dense_sigmoid(xs, w1_ref, b1_ref, _H1, _IN)
        h2 = dense_sigmoid(h1, w2_ref, b2_ref, _H2, _H1)
        h3 = dense_sigmoid(h2, w3_ref, b3_ref, _OUT, _H2)
        o_ref[pl.ds(r0, _SUB), :] = h3[0]
        return carry

    lax.fori_loop(0, n_chunks, chunk_body, 0)


def _round_up(n, m):
    return (n + m - 1) // m * m


def _pallas_mlp(xt3, params, tb):
    """xt3: (8, Bp//128, 128) features-major lane-dense input -> (Bp//128, 128)."""
    w1, b1 = params["w1"], params["b1"]
    w2, b2 = params["w2"], params["b2"]
    w3, b3 = params["w3"], params["b3"]
    bp = xt3.shape[1] * _LANE
    smem = pl.BlockSpec(memory_space=pltpu.MemorySpace.SMEM)
    return pl.pallas_call(
        _mlp_kernel,
        out_shape=jax.ShapeDtypeStruct((bp // _LANE, _LANE), jnp.float32),
        grid=(bp // tb,),
        in_specs=[smem, smem, smem, smem, smem, smem,     # weights/biases resident in SMEM
                  pl.BlockSpec((_IN, tb // _LANE, _LANE), lambda i: (0, i, 0))],
        out_specs=pl.BlockSpec((tb // _LANE, _LANE), lambda i: (i, 0)),
        compiler_params=pltpu.CompilerParams(
            dimension_semantics=("parallel",),            # pipelined; batch steps independent
        ),
    )(w1, b1, w2, b2, w3, b3, xt3)


def _pick_tile(batch, max_tile):
    # Tile must be a multiple of 1024 (so the block's sublane dim is a multiple of 8).
    return min(_round_up(max(max_tile, 1), 1024), _round_up(max(batch, 1), 1024))


def mlp_forward(x, params, *, max_tile=131072):
    """x: (B, 8) float32 -> (B, 1). PyTorch-layout weights W (out,in), b (out,)."""
    B = x.shape[0]
    TB = _pick_tile(B, max_tile)
    Bp = _round_up(B, TB)
    # Layout plumbing: features -> sublanes, batch -> lanes. This is one extra
    # HBM pass; producers that already hold x features-major should use
    # mlp_forward_features_major() below to avoid it.
    xt = jnp.pad(x.astype(jnp.float32), ((0, Bp - B), (0, 0))).T       # (8, Bp)
    out = _pallas_mlp(xt.reshape(_IN, Bp // _LANE, _LANE), params, TB)  # (Bp//128, 128)
    return out.reshape(Bp)[:B].reshape(B, 1)


def mlp_forward_features_major(xt, params, *, max_tile=131072):
    """xt: (8, B) features-major input -> (B, 1); skips the (B,8)->(8,B) relayout."""
    B = xt.shape[1]
    TB = _pick_tile(B, max_tile)
    Bp = _round_up(B, TB)
    xtp = jnp.pad(xt.astype(jnp.float32), ((0, 0), (0, Bp - B)))
    out = _pallas_mlp(xtp.reshape(_IN, Bp // _LANE, _LANE), params, TB)
    return out.reshape(Bp)[:B].reshape(B, 1)


def init_params(key):
    """Deterministic init, PyTorch nn.Linear layout: W (out, in), b (out,)."""
    ks = jax.random.split(key, 6)

    def linear_init(kw, kb, fan_in, fan_out):
        bound = 1.0 / jnp.sqrt(jnp.float32(fan_in))
        w = jax.random.uniform(kw, (fan_out, fan_in), jnp.float32, -bound, bound)
        b = jax.random.uniform(kb, (fan_out,), jnp.float32, -bound, bound)
        return w, b

    w1, b1 = linear_init(ks[0], ks[1], _IN, _H1)
    w2, b2 = linear_init(ks[2], ks[3], _H1, _H2)
    w3, b3 = linear_init(ks[4], ks[5], _H2, _OUT)
    return {"w1": w1, "b1": b1, "w2": w2, "b2": b2, "w3": w3, "b3": b3}


def reference_forward(x, p):
    h = jax.nn.sigmoid(x @ p["w1"].T + p["b1"])
    h = jax.nn.sigmoid(h @ p["w2"].T + p["b2"])
    return jax.nn.sigmoid(h @ p["w3"].T + p["b3"])


if __name__ == "__main__":
    key = jax.random.PRNGKey(0)
    k1, k2, k3, kp = jax.random.split(key, 4)
    params = init_params(kp)

    cases = (
        (k1, 8, {}),                       # tiny batch, single tile, padded tail
        (k2, 1000, {}),                    # non-multiple of 128, single tile
        (k3, 2500, {"max_tile": 1024}),    # multi-tile grid (3 steps) + padded tail
    )
    for kx, batch, kw in cases:
        x = jax.random.normal(kx, (batch, _IN), dtype=jnp.float32)
        out = mlp_forward(x, params, **kw)
        jax.block_until_ready(out)
        ref = reference_forward(x, params)
        assert out.shape == (batch, 1)
        assert jnp.allclose(out, ref, atol=1e-5, rtol=1e-5)

    # Features-major fast path (no wrapper-side transpose) gives identical results.
    x = jax.random.normal(k2, (1000, _IN), dtype=jnp.float32)
    out_fm = mlp_forward_features_major(x.T, params)
    jax.block_until_ready(out_fm)
    assert jnp.allclose(out_fm, reference_forward(x, params), atol=1e-5, rtol=1e-5)

    print("KERNEL_OK")
</pallas_src>

<mosaic_0001>
module attributes {stable_mosaic.version = 11 : i64} {
  func.func @_mlp_kernel(%arg0: i32, %arg1: memref<6x8xf32, #tpu.memory_space<smem>>, %arg2: memref<6xf32, #tpu.memory_space<smem>>, %arg3: memref<4x6xf32, #tpu.memory_space<smem>>, %arg4: memref<4xf32, #tpu.memory_space<smem>>, %arg5: memref<1x4xf32, #tpu.memory_space<smem>>, %arg6: memref<1xf32, #tpu.memory_space<smem>>, %arg7: memref<8x8x128xf32, #tpu.memory_space<vmem>>, %arg8: memref<8x128xf32, #tpu.memory_space<vmem>>) attributes {dimension_semantics = [#tpu.dimension_semantics<parallel>], iteration_bounds = array<i64: 1>, scalar_prefetch = 0 : i64, scratch_operands = 0 : i64, tpu.core_type = #tpu.core_type<tc>, window_params = [{transform_indices = @transform_0, window_bounds = array<i64: 6, 8>}, {transform_indices = @transform_1, window_bounds = array<i64: 6>}, {transform_indices = @transform_2, window_bounds = array<i64: 4, 6>}, {transform_indices = @transform_3, window_bounds = array<i64: 4>}, {transform_indices = @transform_4, window_bounds = array<i64: 1, 4>}, {transform_indices = @transform_5, window_bounds = array<i64: 1>}, {transform_indices = @transform_6, window_bounds = array<i64: 8, 8, 128>}, {transform_indices = @transform_7, window_bounds = array<i64: 8, 128>}]} {
    %c0_i32 = arith.constant 0 : i32
    %c8_i32 = arith.constant 8 : i32
    %0 = arith.muli %c0_i32, %c8_i32 : i32
    %1 = tpu.assume_multiple %0, 8 : i32
    %c0 = arith.constant 0 : index
    %2 = arith.index_cast %1 : i32 to index
    %c0_0 = arith.constant 0 : index
    %3 = vector.load %arg7[%c0, %2, %c0_0] : memref<8x8x128xf32, #tpu.memory_space<vmem>>, vector<1x8x128xf32>
    %4 = vector.shape_cast %3 : vector<1x8x128xf32> to vector<8x128xf32>
    %c1 = arith.constant 1 : index
    %5 = arith.index_cast %1 : i32 to index
    %c0_1 = arith.constant 0 : index
    %6 = vector.load %arg7[%c1, %5, %c0_1] : memref<8x8x128xf32, #tpu.memory_space<vmem>>, vector<1x8x128xf32>
    %7 = vector.shape_cast %6 : vector<1x8x128xf32> to vector<8x128xf32>
    %c2 = arith.constant 2 : index
    %8 = arith.index_cast %1 : i32 to index
    %c0_2 = arith.constant 0 : index
    %9 = vector.load %arg7[%c2, %8, %c0_2] : memref<8x8x128xf32, #tpu.memory_space<vmem>>, vector<1x8x128xf32>
    %10 = vector.shape_cast %9 : vector<1x8x128xf32> to vector<8x128xf32>
    %c3 = arith.constant 3 : index
    %11 = arith.index_cast %1 : i32 to index
    %c0_3 = arith.constant 0 : index
    %12 = vector.load %arg7[%c3, %11, %c0_3] : memref<8x8x128xf32, #tpu.memory_space<vmem>>, vector<1x8x128xf32>
    %13 = vector.shape_cast %12 : vector<1x8x128xf32> to vector<8x128xf32>
    %c4 = arith.constant 4 : index
    %14 = arith.index_cast %1 : i32 to index
    %c0_4 = arith.constant 0 : index
    %15 = vector.load %arg7[%c4, %14, %c0_4] : memref<8x8x128xf32, #tpu.memory_space<vmem>>, vector<1x8x128xf32>
    %16 = vector.shape_cast %15 : vector<1x8x128xf32> to vector<8x128xf32>
    %c5 = arith.constant 5 : index
    %17 = arith.index_cast %1 : i32 to index
    %c0_5 = arith.constant 0 : index
    %18 = vector.load %arg7[%c5, %17, %c0_5] : memref<8x8x128xf32, #tpu.memory_space<vmem>>, vector<1x8x128xf32>
    %19 = vector.shape_cast %18 : vector<1x8x128xf32> to vector<8x128xf32>
    %c6 = arith.constant 6 : index
    %20 = arith.index_cast %1 : i32 to index
    %c0_6 = arith.constant 0 : index
    %21 = vector.load %arg7[%c6, %20, %c0_6] : memref<8x8x128xf32, #tpu.memory_space<vmem>>, vector<1x8x128xf32>
    %22 = vector.shape_cast %21 : vector<1x8x128xf32> to vector<8x128xf32>
    %c7 = arith.constant 7 : index
    %23 = arith.index_cast %1 : i32 to index
    %c0_7 = arith.constant 0 : index
    %24 = vector.load %arg7[%c7, %23, %c0_7] : memref<8x8x128xf32, #tpu.memory_space<vmem>>, vector<1x8x128xf32>
    %25 = vector.shape_cast %24 : vector<1x8x128xf32> to vector<8x128xf32>
    %c0_8 = arith.constant 0 : index
    %c0_9 = arith.constant 0 : index
    %26 = memref.load %arg1[%c0_8, %c0_9] : memref<6x8xf32, #tpu.memory_space<smem>>
    %27 = vector.broadcast %26 : f32 to vector<8x128xf32>
    %28 = arith.mulf %4, %27 : vector<8x128xf32>
    %c0_10 = arith.constant 0 : index
    %c1_11 = arith.constant 1 : index
    %29 = memref.load %arg1[%c0_10, %c1_11] : memref<6x8xf32, #tpu.memory_space<smem>>
    %30 = vector.broadcast %29 : f32 to vector<8x128xf32>
    %31 = arith.mulf %7, %30 : vector<8x128xf32>
    %32 = arith.addf %28, %31 : vector<8x128xf32>
    %c0_12 = arith.constant 0 : index
    %c2_13 = arith.constant 2 : index
    %33 = memref.load %arg1[%c0_12, %c2_13] : memref<6x8xf32, #tpu.memory_space<smem>>
    %34 = vector.broadcast %33 : f32 to vector<8x128xf32>
    %35 = arith.mulf %10, %34 : vector<8x128xf32>
    %36 = arith.addf %32, %35 : vector<8x128xf32>
    %c0_14 = arith.constant 0 : index
    %c3_15 = arith.constant 3 : index
    %37 = memref.load %arg1[%c0_14, %c3_15] : memref<6x8xf32, #tpu.memory_space<smem>>
    %38 = vector.broadcast %37 : f32 to vector<8x128xf32>
    %39 = arith.mulf %13, %38 : vector<8x128xf32>
    %40 = arith.addf %36, %39 : vector<8x128xf32>
    %c0_16 = arith.constant 0 : index
    %c4_17 = arith.constant 4 : index
    %41 = memref.load %arg1[%c0_16, %c4_17] : memref<6x8xf32, #tpu.memory_space<smem>>
    %42 = vector.broadcast %41 : f32 to vector<8x128xf32>
    %43 = arith.mulf %16, %42 : vector<8x128xf32>
    %44 = arith.addf %40, %43 : vector<8x128xf32>
    %c0_18 = arith.constant 0 : index
    %c5_19 = arith.constant 5 : index
    %45 = memref.load %arg1[%c0_18, %c5_19] : memref<6x8xf32, #tpu.memory_space<smem>>
    %46 = vector.broadcast %45 : f32 to vector<8x128xf32>
    %47 = arith.mulf %19, %46 : vector<8x128xf32>
    %48 = arith.addf %44, %47 : vector<8x128xf32>
    %c0_20 = arith.constant 0 : index
    %c6_21 = arith.constant 6 : index
    %49 = memref.load %arg1[%c0_20, %c6_21] : memref<6x8xf32, #tpu.memory_space<smem>>
    %50 = vector.broadcast %49 : f32 to vector<8x128xf32>
    %51 = arith.mulf %22, %50 : vector<8x128xf32>
    %52 = arith.addf %48, %51 : vector<8x128xf32>
    %c0_22 = arith.constant 0 : index
    %c7_23 = arith.constant 7 : index
    %53 = memref.load %arg1[%c0_22, %c7_23] : memref<6x8xf32, #tpu.memory_space<smem>>
    %54 = vector.broadcast %53 : f32 to vector<8x128xf32>
    %55 = arith.mulf %25, %54 : vector<8x128xf32>
    %56 = arith.addf %52, %55 : vector<8x128xf32>
    %c0_24 = arith.constant 0 : index
    %57 = memref.load %arg2[%c0_24] : memref<6xf32, #tpu.memory_space<smem>>
    %58 = vector.broadcast %57 : f32 to vector<8x128xf32>
    %59 = arith.addf %56, %58 : vector<8x128xf32>
    %cst = arith.constant 5.000000e-01 : f32
    %60 = vector.broadcast %cst : f32 to vector<8x128xf32>
    %61 = arith.mulf %59, %60 : vector<8x128xf32>
    %62 = math.tanh %61 : vector<8x128xf32>
    %cst_25 = arith.constant 5.000000e-01 : f32
    %63 = vector.broadcast %cst_25 : f32 to vector<8x128xf32>
    %64 = arith.mulf %62, %63 : vector<8x128xf32>
    %cst_26 = arith.constant 5.000000e-01 : f32
    %65 = vector.broadcast %cst_26 : f32 to vector<8x128xf32>
    %66 = arith.addf %64, %65 : vector<8x128xf32>
    %c1_27 = arith.constant 1 : index
    %c0_28 = arith.constant 0 : index
    %67 = memref.load %arg1[%c1_27, %c0_28] : memref<6x8xf32, #tpu.memory_space<smem>>
    %68 = vector.broadcast %67 : f32 to vector<8x128xf32>
    %69 = arith.mulf %4, %68 : vector<8x128xf32>
    %c1_29 = arith.constant 1 : index
    %c1_30 = arith.constant 1 : index
    %70 = memref.load %arg1[%c1_29, %c1_30] : memref<6x8xf32, #tpu.memory_space<smem>>
    %71 = vector.broadcast %70 : f32 to vector<8x128xf32>
    %72 = arith.mulf %7, %71 : vector<8x128xf32>
    %73 = arith.addf %69, %72 : vector<8x128xf32>
    %c1_31 = arith.constant 1 : index
    %c2_32 = arith.constant 2 : index
    %74 = memref.load %arg1[%c1_31, %c2_32] : memref<6x8xf32, #tpu.memory_space<smem>>
    %75 = vector.broadcast %74 : f32 to vector<8x128xf32>
    %76 = arith.mulf %10, %75 : vector<8x128xf32>
    %77 = arith.addf %73, %76 : vector<8x128xf32>
    %c1_33 = arith.constant 1 : index
    %c3_34 = arith.constant 3 : index
    %78 = memref.load %arg1[%c1_33, %c3_34] : memref<6x8xf32, #tpu.memory_space<smem>>
    %79 = vector.broadcast %78 : f32 to vector<8x128xf32>
    %80 = arith.mulf %13, %79 : vector<8x128xf32>
    %81 = arith.addf %77, %80 : vector<8x128xf32>
    %c1_35 = arith.constant 1 : index
    %c4_36 = arith.constant 4 : index
    %82 = memref.load %arg1[%c1_35, %c4_36] : memref<6x8xf32, #tpu.memory_space<smem>>
    %83 = vector.broadcast %82 : f32 to vector<8x128xf32>
    %84 = arith.mulf %16, %83 : vector<8x128xf32>
    %85 = arith.addf %81, %84 : vector<8x128xf32>
    %c1_37 = arith.constant 1 : index
    %c5_38 = arith.constant 5 : index
    %86 = memref.load %arg1[%c1_37, %c5_38] : memref<6x8xf32, #tpu.memory_space<smem>>
    %87 = vector.broadcast %86 : f32 to vector<8x128xf32>
    %88 = arith.mulf %19, %87 : vector<8x128xf32>
    %89 = arith.addf %85, %88 : vector<8x128xf32>
    %c1_39 = arith.constant 1 : index
    %c6_40 = arith.constant 6 : index
    %90 = memref.load %arg1[%c1_39, %c6_40] : memref<6x8xf32, #tpu.memory_space<smem>>
    %91 = vector.broadcast %90 : f32 to vector<8x128xf32>
    %92 = arith.mulf %22, %91 : vector<8x128xf32>
    %93 = arith.addf %89, %92 : vector<8x128xf32>
    %c1_41 = arith.constant 1 : index
    %c7_42 = arith.constant 7 : index
    %94 = memref.load %arg1[%c1_41, %c7_42] : memref<6x8xf32, #tpu.memory_space<smem>>
    %95 = vector.broadcast %94 : f32 to vector<8x128xf32>
    %96 = arith.mulf %25, %95 : vector<8x128xf32>
    %97 = arith.addf %93, %96 : vector<8x128xf32>
    %c1_43 = arith.constant 1 : index
    %98 = memref.load %arg2[%c1_43] : memref<6xf32, #tpu.memory_space<smem>>
    %99 = vector.broadcast %98 : f32 to vector<8x128xf32>
    %100 = arith.addf %97, %99 : vector<8x128xf32>
    %cst_44 = arith.constant 5.000000e-01 : f32
    %101 = vector.broadcast %cst_44 : f32 to vector<8x128xf32>
    %102 = arith.mulf %100, %101 : vector<8x128xf32>
    %103 = math.tanh %102 : vector<8x128xf32>
    %cst_45 = arith.constant 5.000000e-01 : f32
    %104 = vector.broadcast %cst_45 : f32 to vector<8x128xf32>
    %105 = arith.mulf %103, %104 : vector<8x128xf32>
    %cst_46 = arith.constant 5.000000e-01 : f32
    %106 = vector.broadcast %cst_46 : f32 to vector<8x128xf32>
    %107 = arith.addf %105, %106 : vector<8x128xf32>
    %c2_47 = arith.constant 2 : index
    %c0_48 = arith.constant 0 : index
    %108 = memref.load %arg1[%c2_47, %c0_48] : memref<6x8xf32, #tpu.memory_space<smem>>
    %109 = vector.broadcast %108 : f32 to vector<8x128xf32>
    %110 = arith.mulf %4, %109 : vector<8x128xf32>
    %c2_49 = arith.constant 2 : index
    %c1_50 = arith.constant 1 : index
    %111 = memref.load %arg1[%c2_49, %c1_50] : memref<6x8xf32, #tpu.memory_space<smem>>
    %112 = vector.broadcast %111 : f32 to vector<8x128xf32>
    %113 = arith.mulf %7, %112 : vector<8x128xf32>
    %114 = arith.addf %110, %113 : vector<8x128xf32>
    %c2_51 = arith.constant 2 : index
    %c2_52 = arith.constant 2 : index
    %115 = memref.load %arg1[%c2_51, %c2_52] : memref<6x8xf32, #tpu.memory_space<smem>>
    %116 = vector.broadcast %115 : f32 to vector<8x128xf32>
    %117 = arith.mulf %10, %116 : vector<8x128xf32>
    %118 = arith.addf %114, %117 : vector<8x128xf32>
    %c2_53 = arith.constant 2 : index
    %c3_54 = arith.constant 3 : index
    %119 = memref.load %arg1[%c2_53, %c3_54] : memref<6x8xf32, #tpu.memory_space<smem>>
    %120 = vector.broadcast %119 : f32 to vector<8x128xf32>
    %121 = arith.mulf %13, %120 : vector<8x128xf32>
    %122 = arith.addf %118, %121 : vector<8x128xf32>
    %c2_55 = arith.constant 2 : index
    %c4_56 = arith.constant 4 : index
    %123 = memref.load %arg1[%c2_55, %c4_56] : memref<6x8xf32, #tpu.memory_space<smem>>
    %124 = vector.broadcast %123 : f32 to vector<8x128xf32>
    %125 = arith.mulf %16, %124 : vector<8x128xf32>
    %126 = arith.addf %122, %125 : vector<8x128xf32>
    %c2_57 = arith.constant 2 : index
    %c5_58 = arith.constant 5 : index
    %127 = memref.load %arg1[%c2_57, %c5_58] : memref<6x8xf32, #tpu.memory_space<smem>>
    %128 = vector.broadcast %127 : f32 to vector<8x128xf32>
    %129 = arith.mulf %19, %128 : vector<8x128xf32>
    %130 = arith.addf %126, %129 : vector<8x128xf32>
    %c2_59 = arith.constant 2 : index
    %c6_60 = arith.constant 6 : index
    %131 = memref.load %arg1[%c2_59, %c6_60] : memref<6x8xf32, #tpu.memory_space<smem>>
    %132 = vector.broadcast %131 : f32 to vector<8x128xf32>
    %133 = arith.mulf %22, %132 : vector<8x128xf32>
    %134 = arith.addf %130, %133 : vector<8x128xf32>
    %c2_61 = arith.constant 2 : index
    %c7_62 = arith.constant 7 : index
    %135 = memref.load %arg1[%c2_61, %c7_62] : memref<6x8xf32, #tpu.memory_space<smem>>
    %136 = vector.broadcast %135 : f32 to vector<8x128xf32>
    %137 = arith.mulf %25, %136 : vector<8x128xf32>
    %138 = arith.addf %134, %137 : vector<8x128xf32>
    %c2_63 = arith.constant 2 : index
    %139 = memref.load %arg2[%c2_63] : memref<6xf32, #tpu.memory_space<smem>>
    %140 = vector.broadcast %139 : f32 to vector<8x128xf32>
    %141 = arith.addf %138, %140 : vector<8x128xf32>
    %cst_64 = arith.constant 5.000000e-01 : f32
    %142 = vector.broadcast %cst_64 : f32 to vector<8x128xf32>
    %143 = arith.mulf %141, %142 : vector<8x128xf32>
    %144 = math.tanh %143 : vector<8x128xf32>
    %cst_65 = arith.constant 5.000000e-01 : f32
    %145 = vector.broadcast %cst_65 : f32 to vector<8x128xf32>
    %146 = arith.mulf %144, %145 : vector<8x128xf32>
    %cst_66 = arith.constant 5.000000e-01 : f32
    %147 = vector.broadcast %cst_66 : f32 to vector<8x128xf32>
    %148 = arith.addf %146, %147 : vector<8x128xf32>
    %c3_67 = arith.constant 3 : index
    %c0_68 = arith.constant 0 : index
    %149 = memref.load %arg1[%c3_67, %c0_68] : memref<6x8xf32, #tpu.memory_space<smem>>
    %150 = vector.broadcast %149 : f32 to vector<8x128xf32>
    %151 = arith.mulf %4, %150 : vector<8x128xf32>
    %c3_69 = arith.constant 3 : index
    %c1_70 = arith.constant 1 : index
    %152 = memref.load %arg1[%c3_69, %c1_70] : memref<6x8xf32, #tpu.memory_space<smem>>
    %153 = vector.broadcast %152 : f32 to vector<8x128xf32>
    %154 = arith.mulf %7, %153 : vector<8x128xf32>
    %155 = arith.addf %151, %154 : vector<8x128xf32>
    %c3_71 = arith.constant 3 : index
    %c2_72 = arith.constant 2 : index
    %156 = memref.load %arg1[%c3_71, %c2_72] : memref<6x8xf32, #tpu.memory_space<smem>>
    %157 = vector.broadcast %156 : f32 to vector<8x128xf32>
    %158 = arith.mulf %10, %157 : vector<8x128xf32>
    %159 = arith.addf %155, %158 : vector<8x128xf32>
    %c3_73 = arith.constant 3 : index
    %c3_74 = arith.constant 3 : index
    %160 = memref.load %arg1[%c3_73, %c3_74] : memref<6x8xf32, #tpu.memory_space<smem>>
    %161 = vector.broadcast %160 : f32 to vector<8x128xf32>
    %162 = arith.mulf %13, %161 : vector<8x128xf32>
    %163 = arith.addf %159, %162 : vector<8x128xf32>
    %c3_75 = arith.constant 3 : index
    %c4_76 = arith.constant 4 : index
    %164 = memref.load %arg1[%c3_75, %c4_76] : memref<6x8xf32, #tpu.memory_space<smem>>
    %165 = vector.broadcast %164 : f32 to vector<8x128xf32>
    %166 = arith.mulf %16, %165 : vector<8x128xf32>
    %167 = arith.addf %163, %166 : vector<8x128xf32>
    %c3_77 = arith.constant 3 : index
    %c5_78 = arith.constant 5 : index
    %168 = memref.load %arg1[%c3_77, %c5_78] : memref<6x8xf32, #tpu.memory_space<smem>>
    %169 = vector.broadcast %168 : f32 to vector<8x128xf32>
    %170 = arith.mulf %19, %169 : vector<8x128xf32>
    %171 = arith.addf %167, %170 : vector<8x128xf32>
    %c3_79 = arith.constant 3 : index
    %c6_80 = arith.constant 6 : index
    %172 = memref.load %arg1[%c3_79, %c6_80] : memref<6x8xf32, #tpu.memory_space<smem>>
    %173 = vector.broadcast %172 : f32 to vector<8x128xf32>
    %174 = arith.mulf %22, %173 : vector<8x128xf32>
    %175 = arith.addf %171, %174 : vector<8x128xf32>
    %c3_81 = arith.constant 3 : index
    %c7_82 = arith.constant 7 : index
    %176 = memref.load %arg1[%c3_81, %c7_82] : memref<6x8xf32, #tpu.memory_space<smem>>
    %177 = vector.broadcast %176 : f32 to vector<8x128xf32>
    %178 = arith.mulf %25, %177 : vector<8x128xf32>
    %179 = arith.addf %175, %178 : vector<8x128xf32>
    %c3_83 = arith.constant 3 : index
    %180 = memref.load %arg2[%c3_83] : memref<6xf32, #tpu.memory_space<smem>>
    %181 = vector.broadcast %180 : f32 to vector<8x128xf32>
    %182 = arith.addf %179, %181 : vector<8x128xf32>
    %cst_84 = arith.constant 5.000000e-01 : f32
    %183 = vector.broadcast %cst_84 : f32 to vector<8x128xf32>
    %184 = arith.mulf %182, %183 : vector<8x128xf32>
    %185 = math.tanh %184 : vector<8x128xf32>
    %cst_85 = arith.constant 5.000000e-01 : f32
    %186 = vector.broadcast %cst_85 : f32 to vector<8x128xf32>
    %187 = arith.mulf %185, %186 : vector<8x128xf32>
    %cst_86 = arith.constant 5.000000e-01 : f32
    %188 = vector.broadcast %cst_86 : f32 to vector<8x128xf32>
    %189 = arith.addf %187, %188 : vector<8x128xf32>
    %c4_87 = arith.constant 4 : index
    %c0_88 = arith.constant 0 : index
    %190 = memref.load %arg1[%c4_87, %c0_88] : memref<6x8xf32, #tpu.memory_space<smem>>
    %191 = vector.broadcast %190 : f32 to vector<8x128xf32>
    %192 = arith.mulf %4, %191 : vector<8x128xf32>
    %c4_89 = arith.constant 4 : index
    %c1_90 = arith.constant 1 : index
    %193 = memref.load %arg1[%c4_89, %c1_90] : memref<6x8xf32, #tpu.memory_space<smem>>
    %194 = vector.broadcast %193 : f32 to vector<8x128xf32>
    %195 = arith.mulf %7, %194 : vector<8x128xf32>
    %196 = arith.addf %192, %195 : vector<8x128xf32>
    %c4_91 = arith.constant 4 : index
    %c2_92 = arith.constant 2 : index
    %197 = memref.load %arg1[%c4_91, %c2_92] : memref<6x8xf32, #tpu.memory_space<smem>>
    %198 = vector.broadcast %197 : f32 to vector<8x128xf32>
    %199 = arith.mulf %10, %198 : vector<8x128xf32>
    %200 = arith.addf %196, %199 : vector<8x128xf32>
    %c4_93 = arith.constant 4 : index
    %c3_94 = arith.constant 3 : index
    %201 = memref.load %arg1[%c4_93, %c3_94] : memref<6x8xf32, #tpu.memory_space<smem>>
    %202 = vector.broadcast %201 : f32 to vector<8x128xf32>
    %203 = arith.mulf %13, %202 : vector<8x128xf32>
    %204 = arith.addf %200, %203 : vector<8x128xf32>
    %c4_95 = arith.constant 4 : index
    %c4_96 = arith.constant 4 : index
    %205 = memref.load %arg1[%c4_95, %c4_96] : memref<6x8xf32, #tpu.memory_space<smem>>
    %206 = vector.broadcast %205 : f32 to vector<8x128xf32>
    %207 = arith.mulf %16, %206 : vector<8x128xf32>
    %208 = arith.addf %204, %207 : vector<8x128xf32>
    %c4_97 = arith.constant 4 : index
    %c5_98 = arith.constant 5 : index
    %209 = memref.load %arg1[%c4_97, %c5_98] : memref<6x8xf32, #tpu.memory_space<smem>>
    %210 = vector.broadcast %209 : f32 to vector<8x128xf32>
    %211 = arith.mulf %19, %210 : vector<8x128xf32>
    %212 = arith.addf %208, %211 : vector<8x128xf32>
    %c4_99 = arith.constant 4 : index
    %c6_100 = arith.constant 6 : index
    %213 = memref.load %arg1[%c4_99, %c6_100] : memref<6x8xf32, #tpu.memory_space<smem>>
    %214 = vector.broadcast %213 : f32 to vector<8x128xf32>
    %215 = arith.mulf %22, %214 : vector<8x128xf32>
    %216 = arith.addf %212, %215 : vector<8x128xf32>
    %c4_101 = arith.constant 4 : index
    %c7_102 = arith.constant 7 : index
    %217 = memref.load %arg1[%c4_101, %c7_102] : memref<6x8xf32, #tpu.memory_space<smem>>
    %218 = vector.broadcast %217 : f32 to vector<8x128xf32>
    %219 = arith.mulf %25, %218 : vector<8x128xf32>
    %220 = arith.addf %216, %219 : vector<8x128xf32>
    %c4_103 = arith.constant 4 : index
    %221 = memref.load %arg2[%c4_103] : memref<6xf32, #tpu.memory_space<smem>>
    %222 = vector.broadcast %221 : f32 to vector<8x128xf32>
    %223 = arith.addf %220, %222 : vector<8x128xf32>
    %cst_104 = arith.constant 5.000000e-01 : f32
    %224 = vector.broadcast %cst_104 : f32 to vector<8x128xf32>
    %225 = arith.mulf %223, %224 : vector<8x128xf32>
    %226 = math.tanh %225 : vector<8x128xf32>
    %cst_105 = arith.constant 5.000000e-01 : f32
    %227 = vector.broadcast %cst_105 : f32 to vector<8x128xf32>
    %228 = arith.mulf %226, %227 : vector<8x128xf32>
    %cst_106 = arith.constant 5.000000e-01 : f32
    %229 = vector.broadcast %cst_106 : f32 to vector<8x128xf32>
    %230 = arith.addf %228, %229 : vector<8x128xf32>
    %c5_107 = arith.constant 5 : index
    %c0_108 = arith.constant 0 : index
    %231 = memref.load %arg1[%c5_107, %c0_108] : memref<6x8xf32, #tpu.memory_space<smem>>
    %232 = vector.broadcast %231 : f32 to vector<8x128xf32>
    %233 = arith.mulf %4, %232 : vector<8x128xf32>
    %c5_109 = arith.constant 5 : index
    %c1_110 = arith.constant 1 : index
    %234 = memref.load %arg1[%c5_109, %c1_110] : memref<6x8xf32, #tpu.memory_space<smem>>
    %235 = vector.broadcast %234 : f32 to vector<8x128xf32>
    %236 = arith.mulf %7, %235 : vector<8x128xf32>
    %237 = arith.addf %233, %236 : vector<8x128xf32>
    %c5_111 = arith.constant 5 : index
    %c2_112 = arith.constant 2 : index
    %238 = memref.load %arg1[%c5_111, %c2_112] : memref<6x8xf32, #tpu.memory_space<smem>>
    %239 = vector.broadcast %238 : f32 to vector<8x128xf32>
    %240 = arith.mulf %10, %239 : vector<8x128xf32>
    %241 = arith.addf %237, %240 : vector<8x128xf32>
    %c5_113 = arith.constant 5 : index
    %c3_114 = arith.constant 3 : index
    %242 = memref.load %arg1[%c5_113, %c3_114] : memref<6x8xf32, #tpu.memory_space<smem>>
    %243 = vector.broadcast %242 : f32 to vector<8x128xf32>
    %244 = arith.mulf %13, %243 : vector<8x128xf32>
    %245 = arith.addf %241, %244 : vector<8x128xf32>
    %c5_115 = arith.constant 5 : index
    %c4_116 = arith.constant 4 : index
    %246 = memref.load %arg1[%c5_115, %c4_116] : memref<6x8xf32, #tpu.memory_space<smem>>
    %247 = vector.broadcast %246 : f32 to vector<8x128xf32>
    %248 = arith.mulf %16, %247 : vector<8x128xf32>
    %249 = arith.addf %245, %248 : vector<8x128xf32>
    %c5_117 = arith.constant 5 : index
    %c5_118 = arith.constant 5 : index
    %250 = memref.load %arg1[%c5_117, %c5_118] : memref<6x8xf32, #tpu.memory_space<smem>>
    %251 = vector.broadcast %250 : f32 to vector<8x128xf32>
    %252 = arith.mulf %19, %251 : vector<8x128xf32>
    %253 = arith.addf %249, %252 : vector<8x128xf32>
    %c5_119 = arith.constant 5 : index
    %c6_120 = arith.constant 6 : index
    %254 = memref.load %arg1[%c5_119, %c6_120] : memref<6x8xf32, #tpu.memory_space<smem>>
    %255 = vector.broadcast %254 : f32 to vector<8x128xf32>
    %256 = arith.mulf %22, %255 : vector<8x128xf32>
    %257 = arith.addf %253, %256 : vector<8x128xf32>
    %c5_121 = arith.constant 5 : index
    %c7_122 = arith.constant 7 : index
    %258 = memref.load %arg1[%c5_121, %c7_122] : memref<6x8xf32, #tpu.memory_space<smem>>
    %259 = vector.broadcast %258 : f32 to vector<8x128xf32>
    %260 = arith.mulf %25, %259 : vector<8x128xf32>
    %261 = arith.addf %257, %260 : vector<8x128xf32>
    %c5_123 = arith.constant 5 : index
    %262 = memref.load %arg2[%c5_123] : memref<6xf32, #tpu.memory_space<smem>>
    %263 = vector.broadcast %262 : f32 to vector<8x128xf32>
    %264 = arith.addf %261, %263 : vector<8x128xf32>
    %cst_124 = arith.constant 5.000000e-01 : f32
    %265 = vector.broadcast %cst_124 : f32 to vector<8x128xf32>
    %266 = arith.mulf %264, %265 : vector<8x128xf32>
    %267 = math.tanh %266 : vector<8x128xf32>
    %cst_125 = arith.constant 5.000000e-01 : f32
    %268 = vector.broadcast %cst_125 : f32 to vector<8x128xf32>
    %269 = arith.mulf %267, %268 : vector<8x128xf32>
    %cst_126 = arith.constant 5.000000e-01 : f32
    %270 = vector.broadcast %cst_126 : f32 to vector<8x128xf32>
    %271 = arith.addf %269, %270 : vector<8x128xf32>
    %c0_127 = arith.constant 0 : index
    %c0_128 = arith.constant 0 : index
    %272 = memref.load %arg3[%c0_127, %c0_128] : memref<4x6xf32, #tpu.memory_space<smem>>
    %273 = vector.broadcast %272 : f32 to vector<8x128xf32>
    %274 = arith.mulf %66, %273 : vector<8x128xf32>
    %c0_129 = arith.constant 0 : index
    %c1_130 = arith.constant 1 : index
    %275 = memref.load %arg3[%c0_129, %c1_130] : memref<4x6xf32, #tpu.memory_space<smem>>
    %276 = vector.broadcast %275 : f32 to vector<8x128xf32>
    %277 = arith.mulf %107, %276 : vector<8x128xf32>
    %278 = arith.addf %274, %277 : vector<8x128xf32>
    %c0_131 = arith.constant 0 : index
    %c2_132 = arith.constant 2 : index
    %279 = memref.load %arg3[%c0_131, %c2_132] : memref<4x6xf32, #tpu.memory_space<smem>>
    %280 = vector.broadcast %279 : f32 to vector<8x128xf32>
    %281 = arith.mulf %148, %280 : vector<8x128xf32>
    %282 = arith.addf %278, %281 : vector<8x128xf32>
    %c0_133 = arith.constant 0 : index
    %c3_134 = arith.constant 3 : index
    %283 = memref.load %arg3[%c0_133, %c3_134] : memref<4x6xf32, #tpu.memory_space<smem>>
    %284 = vector.broadcast %283 : f32 to vector<8x128xf32>
    %285 = arith.mulf %189, %284 : vector<8x128xf32>
    %286 = arith.addf %282, %285 : vector<8x128xf32>
    %c0_135 = arith.constant 0 : index
    %c4_136 = arith.constant 4 : index
    %287 = memref.load %arg3[%c0_135, %c4_136] : memref<4x6xf32, #tpu.memory_space<smem>>
    %288 = vector.broadcast %287 : f32 to vector<8x128xf32>
    %289 = arith.mulf %230, %288 : vector<8x128xf32>
    %290 = arith.addf %286, %289 : vector<8x128xf32>
    %c0_137 = arith.constant 0 : index
    %c5_138 = arith.constant 5 : index
    %291 = memref.load %arg3[%c0_137, %c5_138] : memref<4x6xf32, #tpu.memory_space<smem>>
    %292 = vector.broadcast %291 : f32 to vector<8x128xf32>
    %293 = arith.mulf %271, %292 : vector<8x128xf32>
    %294 = arith.addf %290, %293 : vector<8x128xf32>
    %c0_139 = arith.constant 0 : index
    %295 = memref.load %arg4[%c0_139] : memref<4xf32, #tpu.memory_space<smem>>
    %296 = vector.broadcast %295 : f32 to vector<8x128xf32>
    %297 = arith.addf %294, %296 : vector<8x128xf32>
    %cst_140 = arith.constant 5.000000e-01 : f32
    %298 = vector.broadcast %cst_140 : f32 to vector<8x128xf32>
    %299 = arith.mulf %297, %298 : vector<8x128xf32>
    %300 = math.tanh %299 : vector<8x128xf32>
    %cst_141 = arith.constant 5.000000e-01 : f32
    %301 = vector.broadcast %cst_141 : f32 to vector<8x128xf32>
    %302 = arith.mulf %300, %301 : vector<8x128xf32>
    %cst_142 = arith.constant 5.000000e-01 : f32
    %303 = vector.broadcast %cst_142 : f32 to vector<8x128xf32>
    %304 = arith.addf %302, %303 : vector<8x128xf32>
    %c1_143 = arith.constant 1 : index
    %c0_144 = arith.constant 0 : index
    %305 = memref.load %arg3[%c1_143, %c0_144] : memref<4x6xf32, #tpu.memory_space<smem>>
    %306 = vector.broadcast %305 : f32 to vector<8x128xf32>
    %307 = arith.mulf %66, %306 : vector<8x128xf32>
    %c1_145 = arith.constant 1 : index
    %c1_146 = arith.constant 1 : index
    %308 = memref.load %arg3[%c1_145, %c1_146] : memref<4x6xf32, #tpu.memory_space<smem>>
    %309 = vector.broadcast %308 : f32 to vector<8x128xf32>
    %310 = arith.mulf %107, %309 : vector<8x128xf32>
    %311 = arith.addf %307, %310 : vector<8x128xf32>
    %c1_147 = arith.constant 1 : index
    %c2_148 = arith.constant 2 : index
    %312 = memref.load %arg3[%c1_147, %c2_148] : memref<4x6xf32, #tpu.memory_space<smem>>
    %313 = vector.broadcast %312 : f32 to vector<8x128xf32>
    %314 = arith.mulf %148, %313 : vector<8x128xf32>
    %315 = arith.addf %311, %314 : vector<8x128xf32>
    %c1_149 = arith.constant 1 : index
    %c3_150 = arith.constant 3 : index
    %316 = memref.load %arg3[%c1_149, %c3_150] : memref<4x6xf32, #tpu.memory_space<smem>>
    %317 = vector.broadcast %316 : f32 to vector<8x128xf32>
    %318 = arith.mulf %189, %317 : vector<8x128xf32>
    %319 = arith.addf %315, %318 : vector<8x128xf32>
    %c1_151 = arith.constant 1 : index
    %c4_152 = arith.constant 4 : index
    %320 = memref.load %arg3[%c1_151, %c4_152] : memref<4x6xf32, #tpu.memory_space<smem>>
    %321 = vector.broadcast %320 : f32 to vector<8x128xf32>
    %322 = arith.mulf %230, %321 : vector<8x128xf32>
    %323 = arith.addf %319, %322 : vector<8x128xf32>
    %c1_153 = arith.constant 1 : index
    %c5_154 = arith.constant 5 : index
    %324 = memref.load %arg3[%c1_153, %c5_154] : memref<4x6xf32, #tpu.memory_space<smem>>
    %325 = vector.broadcast %324 : f32 to vector<8x128xf32>
    %326 = arith.mulf %271, %325 : vector<8x128xf32>
    %327 = arith.addf %323, %326 : vector<8x128xf32>
    %c1_155 = arith.constant 1 : index
    %328 = memref.load %arg4[%c1_155] : memref<4xf32, #tpu.memory_space<smem>>
    %329 = vector.broadcast %328 : f32 to vector<8x128xf32>
    %330 = arith.addf %327, %329 : vector<8x128xf32>
    %cst_156 = arith.constant 5.000000e-01 : f32
    %331 = vector.broadcast %cst_156 : f32 to vector<8x128xf32>
    %332 = arith.mulf %330, %331 : vector<8x128xf32>
    %333 = math.tanh %332 : vector<8x128xf32>
    %cst_157 = arith.constant 5.000000e-01 : f32
    %334 = vector.broadcast %cst_157 : f32 to vector<8x128xf32>
    %335 = arith.mulf %333, %334 : vector<8x128xf32>
    %cst_158 = arith.constant 5.000000e-01 : f32
    %336 = vector.broadcast %cst_158 : f32 to vector<8x128xf32>
    %337 = arith.addf %335, %336 : vector<8x128xf32>
    %c2_159 = arith.constant 2 : index
    %c0_160 = arith.constant 0 : index
    %338 = memref.load %arg3[%c2_159, %c0_160] : memref<4x6xf32, #tpu.memory_space<smem>>
    %339 = vector.broadcast %338 : f32 to vector<8x128xf32>
    %340 = arith.mulf %66, %339 : vector<8x128xf32>
    %c2_161 = arith.constant 2 : index
    %c1_162 = arith.constant 1 : index
    %341 = memref.load %arg3[%c2_161, %c1_162] : memref<4x6xf32, #tpu.memory_space<smem>>
    %342 = vector.broadcast %341 : f32 to vector<8x128xf32>
    %343 = arith.mulf %107, %342 : vector<8x128xf32>
    %344 = arith.addf %340, %343 : vector<8x128xf32>
    %c2_163 = arith.constant 2 : index
    %c2_164 = arith.constant 2 : index
    %345 = memref.load %arg3[%c2_163, %c2_164] : memref<4x6xf32, #tpu.memory_space<smem>>
    %346 = vector.broadcast %345 : f32 to vector<8x128xf32>
    %347 = arith.mulf %148, %346 : vector<8x128xf32>
    %348 = arith.addf %344, %347 : vector<8x128xf32>
    %c2_165 = arith.constant 2 : index
    %c3_166 = arith.constant 3 : index
    %349 = memref.load %arg3[%c2_165, %c3_166] : memref<4x6xf32, #tpu.memory_space<smem>>
    %350 = vector.broadcast %349 : f32 to vector<8x128xf32>
    %351 = arith.mulf %189, %350 : vector<8x128xf32>
    %352 = arith.addf %348, %351 : vector<8x128xf32>
    %c2_167 = arith.constant 2 : index
    %c4_168 = arith.constant 4 : index
    %353 = memref.load %arg3[%c2_167, %c4_168] : memref<4x6xf32, #tpu.memory_space<smem>>
    %354 = vector.broadcast %353 : f32 to vector<8x128xf32>
    %355 = arith.mulf %230, %354 : vector<8x128xf32>
    %356 = arith.addf %352, %355 : vector<8x128xf32>
    %c2_169 = arith.constant 2 : index
    %c5_170 = arith.constant 5 : index
    %357 = memref.load %arg3[%c2_169, %c5_170] : memref<4x6xf32, #tpu.memory_space<smem>>
    %358 = vector.broadcast %357 : f32 to vector<8x128xf32>
    %359 = arith.mulf %271, %358 : vector<8x128xf32>
    %360 = arith.addf %356, %359 : vector<8x128xf32>
    %c2_171 = arith.constant 2 : index
    %361 = memref.load %arg4[%c2_171] : memref<4xf32, #tpu.memory_space<smem>>
    %362 = vector.broadcast %361 : f32 to vector<8x128xf32>
    %363 = arith.addf %360, %362 : vector<8x128xf32>
    %cst_172 = arith.constant 5.000000e-01 : f32
    %364 = vector.broadcast %cst_172 : f32 to vector<8x128xf32>
    %365 = arith.mulf %363, %364 : vector<8x128xf32>
    %366 = math.tanh %365 : vector<8x128xf32>
    %cst_173 = arith.constant 5.000000e-01 : f32
    %367 = vector.broadcast %cst_173 : f32 to vector<8x128xf32>
    %368 = arith.mulf %366, %367 : vector<8x128xf32>
    %cst_174 = arith.constant 5.000000e-01 : f32
    %369 = vector.broadcast %cst_174 : f32 to vector<8x128xf32>
    %370 = arith.addf %368, %369 : vector<8x128xf32>
    %c3_175 = arith.constant 3 : index
    %c0_176 = arith.constant 0 : index
    %371 = memref.load %arg3[%c3_175, %c0_176] : memref<4x6xf32, #tpu.memory_space<smem>>
    %372 = vector.broadcast %371 : f32 to vector<8x128xf32>
    %373 = arith.mulf %66, %372 : vector<8x128xf32>
    %c3_177 = arith.constant 3 : index
    %c1_178 = arith.constant 1 : index
    %374 = memref.load %arg3[%c3_177, %c1_178] : memref<4x6xf32, #tpu.memory_space<smem>>
    %375 = vector.broadcast %374 : f32 to vector<8x128xf32>
    %376 = arith.mulf %107, %375 : vector<8x128xf32>
    %377 = arith.addf %373, %376 : vector<8x128xf32>
    %c3_179 = arith.constant 3 : index
    %c2_180 = arith.constant 2 : index
    %378 = memref.load %arg3[%c3_179, %c2_180] : memref<4x6xf32, #tpu.memory_space<smem>>
    %379 = vector.broadcast %378 : f32 to vector<8x128xf32>
    %380 = arith.mulf %148, %379 : vector<8x128xf32>
    %381 = arith.addf %377, %380 : vector<8x128xf32>
    %c3_181 = arith.constant 3 : index
    %c3_182 = arith.constant 3 : index
    %382 = memref.load %arg3[%c3_181, %c3_182] : memref<4x6xf32, #tpu.memory_space<smem>>
    %383 = vector.broadcast %382 : f32 to vector<8x128xf32>
    %384 = arith.mulf %189, %383 : vector<8x128xf32>
    %385 = arith.addf %381, %384 : vector<8x128xf32>
    %c3_183 = arith.constant 3 : index
    %c4_184 = arith.constant 4 : index
    %386 = memref.load %arg3[%c3_183, %c4_184] : memref<4x6xf32, #tpu.memory_space<smem>>
    %387 = vector.broadcast %386 : f32 to vector<8x128xf32>
    %388 = arith.mulf %230, %387 : vector<8x128xf32>
    %389 = arith.addf %385, %388 : vector<8x128xf32>
    %c3_185 = arith.constant 3 : index
    %c5_186 = arith.constant 5 : index
    %390 = memref.load %arg3[%c3_185, %c5_186] : memref<4x6xf32, #tpu.memory_space<smem>>
    %391 = vector.broadcast %390 : f32 to vector<8x128xf32>
    %392 = arith.mulf %271, %391 : vector<8x128xf32>
    %393 = arith.addf %389, %392 : vector<8x128xf32>
    %c3_187 = arith.constant 3 : index
    %394 = memref.load %arg4[%c3_187] : memref<4xf32, #tpu.memory_space<smem>>
    %395 = vector.broadcast %394 : f32 to vector<8x128xf32>
    %396 = arith.addf %393, %395 : vector<8x128xf32>
    %cst_188 = arith.constant 5.000000e-01 : f32
    %397 = vector.broadcast %cst_188 : f32 to vector<8x128xf32>
    %398 = arith.mulf %396, %397 : vector<8x128xf32>
    %399 = math.tanh %398 : vector<8x128xf32>
    %cst_189 = arith.constant 5.000000e-01 : f32
    %400 = vector.broadcast %cst_189 : f32 to vector<8x128xf32>
    %401 = arith.mulf %399, %400 : vector<8x128xf32>
    %cst_190 = arith.constant 5.000000e-01 : f32
    %402 = vector.broadcast %cst_190 : f32 to vector<8x128xf32>
    %403 = arith.addf %401, %402 : vector<8x128xf32>
    %c0_191 = arith.constant 0 : index
    %c0_192 = arith.constant 0 : index
    %404 = memref.load %arg5[%c0_191, %c0_192] : memref<1x4xf32, #tpu.memory_space<smem>>
    %405 = vector.broadcast %404 : f32 to vector<8x128xf32>
    %406 = arith.mulf %304, %405 : vector<8x128xf32>
    %c0_193 = arith.constant 0 : index
    %c1_194 = arith.constant 1 : index
    %407 = memref.load %arg5[%c0_193, %c1_194] : memref<1x4xf32, #tpu.memory_space<smem>>
    %408 = vector.broadcast %407 : f32 to vector<8x128xf32>
    %409 = arith.mulf %337, %408 : vector<8x128xf32>
    %410 = arith.addf %406, %409 : vector<8x128xf32>
    %c0_195 = arith.constant 0 : index
    %c2_196 = arith.constant 2 : index
    %411 = memref.load %arg5[%c0_195, %c2_196] : memref<1x4xf32, #tpu.memory_space<smem>>
    %412 = vector.broadcast %411 : f32 to vector<8x128xf32>
    %413 = arith.mulf %370, %412 : vector<8x128xf32>
    %414 = arith.addf %410, %413 : vector<8x128xf32>
    %c0_197 = arith.constant 0 : index
    %c3_198 = arith.constant 3 : index
    %415 = memref.load %arg5[%c0_197, %c3_198] : memref<1x4xf32, #tpu.memory_space<smem>>
    %416 = vector.broadcast %415 : f32 to vector<8x128xf32>
    %417 = arith.mulf %403, %416 : vector<8x128xf32>
    %418 = arith.addf %414, %417 : vector<8x128xf32>
    %c0_199 = arith.constant 0 : index
    %419 = memref.load %arg6[%c0_199] : memref<1xf32, #tpu.memory_space<smem>>
    %420 = vector.broadcast %419 : f32 to vector<8x128xf32>
    %421 = arith.addf %418, %420 : vector<8x128xf32>
    %cst_200 = arith.constant 5.000000e-01 : f32
    %422 = vector.broadcast %cst_200 : f32 to vector<8x128xf32>
    %423 = arith.mulf %421, %422 : vector<8x128xf32>
    %424 = math.tanh %423 : vector<8x128xf32>
    %cst_201 = arith.constant 5.000000e-01 : f32
    %425 = vector.broadcast %cst_201 : f32 to vector<8x128xf32>
    %426 = arith.mulf %424, %425 : vector<8x128xf32>
    %cst_202 = arith.constant 5.000000e-01 : f32
    %427 = vector.broadcast %cst_202 : f32 to vector<8x128xf32>
    %428 = arith.addf %426, %427 : vector<8x128xf32>
    %429 = arith.index_cast %1 : i32 to index
    %c0_203 = arith.constant 0 : index
    %430 = vector.load %arg8[%429, %c0_203] : memref<8x128xf32, #tpu.memory_space<vmem>>, vector<8x128xf32>
    tpu.vector_store %arg8[%429, %c0_203], %428 {strides = array<i32>} : memref<8x128xf32, #tpu.memory_space<vmem>>, vector<8x128xf32>,
    %c1_i32 = arith.constant 1 : i32
    return
  }
  func.func @transform_0(%arg0: i32) -> (i32, i32) {
    %c0_i32 = arith.constant 0 : i32
    %c0_i32_0 = arith.constant 0 : i32
    %c0_i32_1 = arith.constant 0 : i32
    return %c0_i32, %c0_i32_0 : i32, i32
  }
  func.func @transform_1(%arg0: i32) -> i32 {
    %c0_i32 = arith.constant 0 : i32
    %c0_i32_0 = arith.constant 0 : i32
    return %c0_i32 : i32
  }
  func.func @transform_2(%arg0: i32) -> (i32, i32) {
    %c0_i32 = arith.constant 0 : i32
    %c0_i32_0 = arith.constant 0 : i32
    %c0_i32_1 = arith.constant 0 : i32
    return %c0_i32, %c0_i32_0 : i32, i32
  }
  func.func @transform_3(%arg0: i32) -> i32 {
    %c0_i32 = arith.constant 0 : i32
    %c0_i32_0 = arith.constant 0 : i32
    return %c0_i32 : i32
  }
  func.func @transform_4(%arg0: i32) -> (i32, i32) {
    %c0_i32 = arith.constant 0 : i32
    %c0_i32_0 = arith.constant 0 : i32
    %c0_i32_1 = arith.constant 0 : i32
    return %c0_i32, %c0_i32_0 : i32, i32
  }
  func.func @transform_5(%arg0: i32) -> i32 {
    %c0_i32 = arith.constant 0 : i32
    %c0_i32_0 = arith.constant 0 : i32
    return %c0_i32 : i32
  }
  func.func @transform_6(%arg0: i32) -> (i32, i32, i32) {
    %c0_i32 = arith.constant 0 : i32
    %c0_i32_0 = arith.constant 0 : i32
    %c0_i32_1 = arith.constant 0 : i32
    return %c0_i32, %arg0, %c0_i32_0 : i32, i32, i32
  }
  func.func @transform_7(%arg0: i32) -> (i32, i32) {
    %c0_i32 = arith.constant 0 : i32
    %c0_i32_0 = arith.constant 0 : i32
    return %arg0, %c0_i32 : i32, i32
  }
}

</mosaic_0001>

<llo_original>
// kernel: tpu_custom_call.1
$region0: #{tpu_custom_call.1}
  #allocation0 [shape = 'u32[]', space=smem, size = 0x4, offset = 0x4, fixed_abs, tag = 'smem constant byte address 0x4 - core index']
  #allocation1 [shape = 'u32[144,128]{1,0:T(1,128)}', space=vmem, size = 0x12000, scoped, tag = 'internal scratch']
  #allocation2 [shape = 'f32[1]{0:T(128)S(6)}', space=smem, size = 0x200, scoped, tag = 'scoped memory for tpu_custom_call.1']
  %s0 = inlined_call_operand.hbm [shape: f32[6,8], index: 0, kind: input, shape index: {}]
  %s1 = inlined_call_operand.vmem [shape: f32[6], index: 1, kind: input, shape index: {}]
  %s2 = inlined_call_operand.vmem [shape: f32[4,6], index: 2, kind: input, shape index: {}]
  %s3 = inlined_call_operand.vmem [shape: f32[4], index: 3, kind: input, shape index: {}]
  %s4 = inlined_call_operand.vmem [shape: f32[1,4], index: 4, kind: input, shape index: {}]
  %s5 = inlined_call_operand.<no memory space> [shape: f32[1], index: 5, kind: input, shape index: {}]
  %s6 = inlined_call_operand.hbm [shape: f32[8,8,128], index: 6, kind: input, shape index: {}]
  %s7 = inlined_call_operand.hbm [shape: f32[8,128], index: 7, kind: output, shape index: {}]
  %s8 = sld [smem:[#allocation0]]
  $region62: #{tpu_custom_call.1} parent=0
    _
  %s10 = ssub.s32 1, %s8
  %s11 = scalar_select 0, %s10, %s8
  %12 = sst [smem:[#allocation2]] %s5
  $region1: #{tpu_custom_call.1} parent=0
    #allocation3 [shape = 'u8[4096]{0}', space=smem, size = 0x1000, scoped, tag = 'input window, operand 0, single buffered']
    #allocation4 [shape = 's32[1]{0}', space=sflag, size = 0x4, scoped, tag = 'scoped memory for tpu_custom_call.1']
    #allocation5 [shape = 's32[1]{0}', space=sflag, size = 0x4, scoped, tag = 'scoped memory for tpu_custom_call.1']
    #allocation6 [shape = 's32[1]{0}', space=sflag, size = 0x4, scoped, tag = 'scoped memory for tpu_custom_call.1']
    #allocation7 [shape = 's32[1]{0}', space=sflag, size = 0x4, scoped, tag = 'scoped memory for tpu_custom_call.1']
    #allocation8 [shape = 'u8[512]{0}', space=smem, size = 0x200, scoped, tag = 'input window, operand 1, single buffered']
    #allocation9 [shape = 'u8[2048]{0}', space=smem, size = 0x800, scoped, tag = 'input window, operand 2, single buffered']
    #allocation10 [shape = 's32[1]{0}', space=sflag, size = 0x4, scoped, tag = 'scoped memory for tpu_custom_call.1']
    #allocation11 [shape = 'u8[512]{0}', space=smem, size = 0x200, scoped, tag = 'input window, operand 3, single buffered']
    #allocation12 [shape = 'u8[512]{0}', space=smem, size = 0x200, scoped, tag = 'input window, operand 4, single buffered']
    #allocation13 [shape = 's32[1]{0}', space=sflag, size = 0x4, scoped, tag = 'scoped memory for tpu_custom_call.1']
    #allocation14 [shape = 'u8[32768]{0}', space=vmem, size = 0x8000, scoped, tag = 'input window, operand 6, single buffered']
    #allocation15 [shape = 'u8[4096]{0}', space=vmem, size = 0x1000, scoped, tag = 'output window, operand 0, single buffered']
    %13 = vsyncpa [#allocation6], 0
    %14 = vsyncpa [#allocation7], 0
    %15 = vsyncpa [#allocation10], 0
    %16 = vsyncpa [#allocation13], 0
    %17 = vsyncpa [#allocation4], 0
    %18 = vsyncpa [#allocation5], 0
    // Predicated region
    $region2: #{tpu_custom_call.1} parent=1 // pred_check
      _
    $region3: #{tpu_custom_call.1} parent=1 // pred_check_branch
      %20 = sbr.rel (0) target = $region5
    $region4: #{tpu_custom_call.1} parent=1 // pred_region
      %s22 = ssub.s32 128, 128
      %23 = vsyncadd [#allocation6], %s22
      %26 = dma.hbm_to_smem %s0, 128, [#allocation3], [#allocation6]
    $region5: #{tpu_custom_call.1} parent=1 // pred_fallthru
      _
    // Predicated region
    $region6: #{tpu_custom_call.1} parent=1 // pred_check
      _
    $region7: #{tpu_custom_call.1} parent=1 // pred_check_branch
      %28 = sbr.rel (0) target = $region9
    $region8: #{tpu_custom_call.1} parent=1 // pred_region
      %s30 = ssub.s32 16, 16
      %31 = vsyncadd [#allocation7], %s30
      %s33 = sshll.u32 %s1, 4
      %s34 = int_to_ptr.vmem [resolvable:$true] %s33
      %36 = dma.vmem_to_smem %s34, 16, [#allocation8], [#allocation7]
    $region9: #{tpu_custom_call.1} parent=1 // pred_fallthru
      _
    // Predicated region
    $region10: #{tpu_custom_call.1} parent=1 // pred_check
      _
    $region11: #{tpu_custom_call.1} parent=1 // pred_check_branch
      %38 = sbr.rel (0) target = $region13
    $region12: #{tpu_custom_call.1} parent=1 // pred_region
      %s40 = ssub.s32 64, 64
      %41 = vsyncadd [#allocation10], %s40
      %s43 = sshll.u32 %s2, 4
      %s44 = int_to_ptr.vmem [resolvable:$true] %s43
      %46 = dma.vmem_to_smem %s44, 64, [#allocation9], [#allocation10]
    $region13: #{tpu_custom_call.1} parent=1 // pred_fallthru
      _
    // Predicated region
    $region14: #{tpu_custom_call.1} parent=1 // pred_check
      _
    $region15: #{tpu_custom_call.1} parent=1 // pred_check_branch
      %48 = sbr.rel (0) target = $region17
    $region16: #{tpu_custom_call.1} parent=1 // pred_region
      %s50 = ssub.s32 16, 16
      %51 = vsyncadd [#allocation10], %s50
      %s53 = sshll.u32 %s3, 4
      %s54 = int_to_ptr.vmem [resolvable:$true] %s53
      %56 = dma.vmem_to_smem %s54, 16, [#allocation11], [#allocation10]
    $region17: #{tpu_custom_call.1} parent=1 // pred_fallthru
      _
    // Predicated region
    $region18: #{tpu_custom_call.1} parent=1 // pred_check
      _
    $region19: #{tpu_custom_call.1} parent=1 // pred_check_branch
      %58 = sbr.rel (0) target = $region21
    $region20: #{tpu_custom_call.1} parent=1 // pred_region
      %s60 = ssub.s32 16, 16
      %61 = vsyncadd [#allocation13], %s60
      %s63 = sshll.u32 %s4, 4
      %s64 = int_to_ptr.vmem [resolvable:$true] %s63
      %66 = dma.vmem_to_smem %s64, 16, [#allocation12], [#allocation13]
    $region21: #{tpu_custom_call.1} parent=1 // pred_fallthru
      _
    // Predicated region
    $region22: #{tpu_custom_call.1} parent=1 // pred_check
      _
    $region23: #{tpu_custom_call.1} parent=1 // pred_check_branch
      %68 = sbr.rel (0) target = $region25
    $region24: #{tpu_custom_call.1} parent=1 // pred_region
      _
    $region25: #{tpu_custom_call.1} parent=1 // pred_fallthru
      _
    // Predicated region
    $region26: #{tpu_custom_call.1} parent=1 // pred_check
      _
    $region27: #{tpu_custom_call.1} parent=1 // pred_check_branch
      %70 = sbr.rel (0) target = $region29
    $region28: #{tpu_custom_call.1} parent=1 // pred_region
      %s72 = ssub.s32 1024, 1024
      %73 = vsyncadd [#allocation4], %s72
      %s74 = sshll.u32 [#allocation14], 4
      %s75 = int_to_ptr.vmem [resolvable:$true] %s74
      %80 = dma.hbm_to_vmem [thread:$0]  %s6, 1024, %s75, [#allocation4], 128, 128, 8
    $region29: #{tpu_custom_call.1} parent=1 // pred_fallthru
      _
    // Predicated region
    $region30: #{tpu_custom_call.1} parent=1 // pred_check
      _
    $region31: #{tpu_custom_call.1} parent=1 // pred_check_branch
      %82 = sbr.rel (0) target = $region33
    $region32: #{tpu_custom_call.1} parent=1 // pred_region
      %83 = dma.done [#allocation6], 128
    $region33: #{tpu_custom_call.1} parent=1 // pred_fallthru
      _
    // Predicated region
    $region34: #{tpu_custom_call.1} parent=1 // pred_check
      _
    $region35: #{tpu_custom_call.1} parent=1 // pred_check_branch
      %85 = sbr.rel (0) target = $region37
    $region36: #{tpu_custom_call.1} parent=1 // pred_region
      %86 = dma.done [#allocation7], 16
    $region37: #{tpu_custom_call.1} parent=1 // pred_fallthru
      _
    // Predicated region
    $region38: #{tpu_custom_call.1} parent=1 // pred_check
      _
    $region39: #{tpu_custom_call.1} parent=1 // pred_check_branch
      %88 = sbr.rel (0) target = $region41
    $region40: #{tpu_custom_call.1} parent=1 // pred_region
      %89 = dma.done [#allocation10], 64
    $region41: #{tpu_custom_call.1} parent=1 // pred_fallthru
      _
    // Predicated region
    $region42: #{tpu_custom_call.1} parent=1 // pred_check
      _
    $region43: #{tpu_custom_call.1} parent=1 // pred_check_branch
      %91 = sbr.rel (0) target = $region45
    $region44: #{tpu_custom_call.1} parent=1 // pred_region
      %92 = dma.done [#allocation10], 16
    $region45: #{tpu_custom_call.1} parent=1 // pred_fallthru
      _
    // Predicated region
    $region46: #{tpu_custom_call.1} parent=1 // pred_check
      _
    $region47: #{tpu_custom_call.1} parent=1 // pred_check_branch
      %94 = sbr.rel (0) target = $region49
    $region48: #{tpu_custom_call.1} parent=1 // pred_region
      %95 = dma.done [#allocation13], 16
    $region49: #{tpu_custom_call.1} parent=1 // pred_fallthru
      _
    // Predicated region
    $region50: #{tpu_custom_call.1} parent=1 // pred_check
      _
    $region51: #{tpu_custom_call.1} parent=1 // pred_check_branch
      %97 = sbr.rel (0) target = $region53
    $region52: #{tpu_custom_call.1} parent=1 // pred_region
      %98 = dma.done [#allocation4], 1024
    $region53: #{tpu_custom_call.1} parent=1 // pred_fallthru
      _
    %99 = sfence
    %v100 = vld [vmem:[#allocation14] sm:$0xff]
    %s101 = sadd.s32 0, 8
    %s102 = scalar_lea.vmem [#allocation14], %s101
    %v103 = vld [vmem:[%s102] sm:$0xff]
    %s104 = sadd.s32 0, 16
    %s105 = scalar_lea.vmem [#allocation14], %s104
    %v106 = vld [vmem:[%s105] sm:$0xff]
    %s107 = sadd.s32 0, 24
    %s108 = scalar_lea.vmem [#allocation14], %s107
    %v109 = vld [vmem:[%s108] sm:$0xff]
    %s110 = sadd.s32 0, 32
    %s111 = scalar_lea.vmem [#allocation14], %s110
    %v112 = vld [vmem:[%s111] sm:$0xff]
    %s113 = sadd.s32 0, 40
    %s114 = scalar_lea.vmem [#allocation14], %s113
    %v115 = vld [vmem:[%s114] sm:$0xff]
    %s116 = sadd.s32 0, 48
    %s117 = scalar_lea.vmem [#allocation14], %s116
    %v118 = vld [vmem:[%s117] sm:$0xff]
    %s119 = sadd.s32 0, 56
    %s120 = scalar_lea.vmem [#allocation14], %s119
    %v121 = vld [vmem:[%s120] sm:$0xff]
    %s122 = sld [smem:[#allocation3]]
    %v123 = vstv %s122
    %v124 = vmul.f32 %v100, %v123
    %s125 = sld [smem:[#allocation3 + $0x1]]
    %v126 = vstv %s125
    %v127 = vmul.f32 %v103, %v126
    %v128 = vadd.f32 %v124, %v127
    %s129 = sld [smem:[#allocation3 + $0x2]]
    %v130 = vstv %s129
    %v131 = vmul.f32 %v106, %v130
    %v132 = vadd.f32 %v128, %v131
    %s133 = sld [smem:[#allocation3 + $0x3]]
    %v134 = vstv %s133
    %v135 = vmul.f32 %v109, %v134
    %v136 = vadd.f32 %v132, %v135
    %s137 = sld [smem:[#allocation3 + $0x4]]
    %v138 = vstv %s137
    %v139 = vmul.f32 %v112, %v138
    %v140 = vadd.f32 %v136, %v139
    %s141 = sld [smem:[#allocation3 + $0x5]]
    %v142 = vstv %s141
    %v143 = vmul.f32 %v115, %v142
    %v144 = vadd.f32 %v140, %v143
    %s145 = sld [smem:[#allocation3 + $0x6]]
    %v146 = vstv %s145
    %v147 = vmul.f32 %v118, %v146
    %v148 = vadd.f32 %v144, %v147
    %s149 = sld [smem:[#allocation3 + $0x7]]
    %v150 = vstv %s149
    %v151 = vmul.f32 %v121, %v150
    %v152 = vadd.f32 %v148, %v151
    %s153 = sld [smem:[#allocation8]]
    %v154 = vstv %s153
    %v155 = vadd.f32 %v152, %v154
    %v156 = vmul.f32 %v155, 0.5
    %v157 = vtanh.pop %v156
    %v158 = vmul.f32 %v157, 0.5
    %v159 = vadd.f32 %v158, 0.5
    %s160 = sld [smem:[#allocation3 + $0x80]]
    %v161 = vstv %s160
    %v162 = vmul.f32 %v100, %v161
    %s163 = sld [smem:[#allocation3 + $0x81]]
    %v164 = vstv %s163
    %v165 = vmul.f32 %v103, %v164
    %v166 = vadd.f32 %v162, %v165
    %s167 = sld [smem:[#allocation3 + $0x82]]
    %v168 = vstv %s167
    %v169 = vmul.f32 %v106, %v168
    %v170 = vadd.f32 %v166, %v169
    %s171 = sld [smem:[#allocation3 + $0x83]]
    %v172 = vstv %s171
    %v173 = vmul.f32 %v109, %v172
    %v174 = vadd.f32 %v170, %v173
    %s175 = sld [smem:[#allocation3 + $0x84]]
    %v176 = vstv %s175
    %v177 = vmul.f32 %v112, %v176
    %v178 = vadd.f32 %v174, %v177
    %s179 = sld [smem:[#allocation3 + $0x85]]
    %v180 = vstv %s179
    %v181 = vmul.f32 %v115, %v180
    %v182 = vadd.f32 %v178, %v181
    %s183 = sld [smem:[#allocation3 + $0x86]]
    %v184 = vstv %s183
    %v185 = vmul.f32 %v118, %v184
    %v186 = vadd.f32 %v182, %v185
    %s187 = sld [smem:[#allocation3 + $0x87]]
    %v188 = vstv %s187
    %v189 = vmul.f32 %v121, %v188
    %v190 = vadd.f32 %v186, %v189
    %s191 = sld [smem:[#allocation8 + $0x1]]
    %v192 = vstv %s191
    %v193 = vadd.f32 %v190, %v192
    %v194 = vmul.f32 %v193, 0.5
    %v195 = vtanh.pop %v194
    %v196 = vmul.f32 %v195, 0.5
    %v197 = vadd.f32 %v196, 0.5
    %s198 = sld [smem:[#allocation3 + $0x100]]
    %v199 = vstv %s198
    %v200 = vmul.f32 %v100, %v199
    %s201 = sld [smem:[#allocation3 + $0x101]]
    %v202 = vstv %s201
    %v203 = vmul.f32 %v103, %v202
    %v204 = vadd.f32 %v200, %v203
    %s205 = sld [smem:[#allocation3 + $0x102]]
    %v206 = vstv %s205
    %v207 = vmul.f32 %v106, %v206
    %v208 = vadd.f32 %v204, %v207
    %s209 = sld [smem:[#allocation3 + $0x103]]
    %v210 = vstv %s209
    %v211 = vmul.f32 %v109, %v210
    %v212 = vadd.f32 %v208, %v211
    %s213 = sld [smem:[#allocation3 + $0x104]]
    %v214 = vstv %s213
    %v215 = vmul.f32 %v112, %v214
    %v216 = vadd.f32 %v212, %v215
    %s217 = sld [smem:[#allocation3 + $0x105]]
    %v218 = vstv %s217
    %v219 = vmul.f32 %v115, %v218
    %v220 = vadd.f32 %v216, %v219
    %s221 = sld [smem:[#allocation3 + $0x106]]
    %v222 = vstv %s221
    %v223 = vmul.f32 %v118, %v222
    %v224 = vadd.f32 %v220, %v223
    %s225 = sld [smem:[#allocation3 + $0x107]]
    %v226 = vstv %s225
    %v227 = vmul.f32 %v121, %v226
    %v228 = vadd.f32 %v224, %v227
    %s229 = sld [smem:[#allocation8 + $0x2]]
    %v230 = vstv %s229
    %v231 = vadd.f32 %v228, %v230
    %v232 = vmul.f32 %v231, 0.5
    %v233 = vtanh.pop %v232
    %v234 = vmul.f32 %v233, 0.5
    %v235 = vadd.f32 %v234, 0.5
    %s236 = sld [smem:[#allocation3 + $0x180]]
    %v237 = vstv %s236
    %v238 = vmul.f32 %v100, %v237
    %s239 = sld [smem:[#allocation3 + $0x181]]
    %v240 = vstv %s239
    %v241 = vmul.f32 %v103, %v240
    %v242 = vadd.f32 %v238, %v241
    %s243 = sld [smem:[#allocation3 + $0x182]]
    %v244 = vstv %s243
    %v245 = vmul.f32 %v106, %v244
    %v246 = vadd.f32 %v242, %v245
    %s247 = sld [smem:[#allocation3 + $0x183]]
    %v248 = vstv %s247
    %v249 = vmul.f32 %v109, %v248
    %v250 = vadd.f32 %v246, %v249
    %s251 = sld [smem:[#allocation3 + $0x184]]
    %v252 = vstv %s251
    %v253 = vmul.f32 %v112, %v252
    %v254 = vadd.f32 %v250, %v253
    %s255 = sld [smem:[#allocation3 + $0x185]]
    %v256 = vstv %s255
    %v257 = vmul.f32 %v115, %v256
    %v258 = vadd.f32 %v254, %v257
    %s259 = sld [smem:[#allocation3 + $0x186]]
    %v260 = vstv %s259
    %v261 = vmul.f32 %v118, %v260
    %v262 = vadd.f32 %v258, %v261
    %s263 = sld [smem:[#allocation3 + $0x187]]
    %v264 = vstv %s263
    %v265 = vmul.f32 %v121, %v264
    %v266 = vadd.f32 %v262, %v265
    %s267 = sld [smem:[#allocation8 + $0x3]]
    %v268 = vstv %s267
    %v269 = vadd.f32 %v266, %v268
    %v270 = vmul.f32 %v269, 0.5
    %v271 = vtanh.pop %v270
    %v272 = vmul.f32 %v271, 0.5
    %v273 = vadd.f32 %v272, 0.5
    %s274 = sld [smem:[#allocation3 + $0x200]]
    %v275 = vstv %s274
    %v276 = vmul.f32 %v100, %v275
    %s277 = sld [smem:[#allocation3 + $0x201]]
    %v278 = vstv %s277
    %v279 = vmul.f32 %v103, %v278
    %v280 = vadd.f32 %v276, %v279
    %s281 = sld [smem:[#allocation3 + $0x202]]
    %v282 = vstv %s281
    %v283 = vmul.f32 %v106, %v282
    %v284 = vadd.f32 %v280, %v283
    %s285 = sld [smem:[#allocation3 + $0x203]]
    %v286 = vstv %s285
    %v287 = vmul.f32 %v109, %v286
    %v288 = vadd.f32 %v284, %v287
    %s289 = sld [smem:[#allocation3 + $0x204]]
    %v290 = vstv %s289
    %v291 = vmul.f32 %v112, %v290
    %v292 = vadd.f32 %v288, %v291
    %s293 = sld [smem:[#allocation3 + $0x205]]
    %v294 = vstv %s293
    %v295 = vmul.f32 %v115, %v294
    %v296 = vadd.f32 %v292, %v295
    %s297 = sld [smem:[#allocation3 + $0x206]]
    %v298 = vstv %s297
    %v299 = vmul.f32 %v118, %v298
    %v300 = vadd.f32 %v296, %v299
    %s301 = sld [smem:[#allocation3 + $0x207]]
    %v302 = vstv %s301
    %v303 = vmul.f32 %v121, %v302
    %v304 = vadd.f32 %v300, %v303
    %s305 = sld [smem:[#allocation8 + $0x4]]
    %v306 = vstv %s305
    %v307 = vadd.f32 %v304, %v306
    %v308 = vmul.f32 %v307, 0.5
    %v309 = vtanh.pop %v308
    %v310 = vmul.f32 %v309, 0.5
    %v311 = vadd.f32 %v310, 0.5
    %s312 = sld [smem:[#allocation3 + $0x280]]
    %v313 = vstv %s312
    %v314 = vmul.f32 %v100, %v313
    %s315 = sld [smem:[#allocation3 + $0x281]]
    %v316 = vstv %s315
    %v317 = vmul.f32 %v103, %v316
    %v318 = vadd.f32 %v314, %v317
    %s319 = sld [smem:[#allocation3 + $0x282]]
    %v320 = vstv %s319
    %v321 = vmul.f32 %v106, %v320
    %v322 = vadd.f32 %v318, %v321
    %s323 = sld [smem:[#allocation3 + $0x283]]
    %v324 = vstv %s323
    %v325 = vmul.f32 %v109, %v324
    %v326 = vadd.f32 %v322, %v325
    %s327 = sld [smem:[#allocation3 + $0x284]]
    %v328 = vstv %s327
    %v329 = vmul.f32 %v112, %v328
    %v330 = vadd.f32 %v326, %v329
    %s331 = sld [smem:[#allocation3 + $0x285]]
    %v332 = vstv %s331
    %v333 = vmul.f32 %v115, %v332
    %v334 = vadd.f32 %v330, %v333
    %s335 = sld [smem:[#allocation3 + $0x286]]
    %v336 = vstv %s335
    %v337 = vmul.f32 %v118, %v336
    %v338 = vadd.f32 %v334, %v337
    %s339 = sld [smem:[#allocation3 + $0x287]]
    %v340 = vstv %s339
    %v341 = vmul.f32 %v121, %v340
    %v342 = vadd.f32 %v338, %v341
    %s343 = sld [smem:[#allocation8 + $0x5]]
    %v344 = vstv %s343
    %v345 = vadd.f32 %v342, %v344
    %v346 = vmul.f32 %v345, 0.5
    %v347 = vtanh.pop %v346
    %v348 = vmul.f32 %v347, 0.5
    %v349 = vadd.f32 %v348, 0.5
    %s350 = sld [smem:[#allocation9]]
    %v351 = vstv %s350
    %v352 = vmul.f32 %v159, %v351
    %s353 = sld [smem:[#allocation9 + $0x1]]
    %v354 = vstv %s353
    %v355 = vmul.f32 %v197, %v354
    %v356 = vadd.f32 %v352, %v355
    %s357 = sld [smem:[#allocation9 + $0x2]]
    %v358 = vstv %s357
    %v359 = vmul.f32 %v235, %v358
    %v360 = vadd.f32 %v356, %v359
    %s361 = sld [smem:[#allocation9 + $0x3]]
    %v362 = vstv %s361
    %v363 = vmul.f32 %v273, %v362
    %v364 = vadd.f32 %v360, %v363
    %s365 = sld [smem:[#allocation9 + $0x4]]
    %v366 = vstv %s365
    %v367 = vmul.f32 %v311, %v366
    %v368 = vadd.f32 %v364, %v367
    %s369 = sld [smem:[#allocation9 + $0x5]]
    %v370 = vstv %s369
    %v371 = vmul.f32 %v349, %v370
    %v372 = vadd.f32 %v368, %v371
    %s373 = sld [smem:[#allocation11]]
    %v374 = vstv %s373
    %v375 = vadd.f32 %v372, %v374
    %v376 = vmul.f32 %v375, 0.5
    %v377 = vtanh.pop %v376
    %v378 = vmul.f32 %v377, 0.5
    %v379 = vadd.f32 %v378, 0.5
    %s380 = sld [smem:[#allocation9 + $0x80]]
    %v381 = vstv %s380
    %v382 = vmul.f32 %v159, %v381
    %s383 = sld [smem:[#allocation9 + $0x81]]
    %v384 = vstv %s383
    %v385 = vmul.f32 %v197, %v384
    %v386 = vadd.f32 %v382, %v385
    %s387 = sld [smem:[#allocation9 + $0x82]]
    %v388 = vstv %s387
    %v389 = vmul.f32 %v235, %v388
    %v390 = vadd.f32 %v386, %v389
    %s391 = sld [smem:[#allocation9 + $0x83]]
    %v392 = vstv %s391
    %v393 = vmul.f32 %v273, %v392
    %v394 = vadd.f32 %v390, %v393
    %s395 = sld [smem:[#allocation9 + $0x84]]
    %v396 = vstv %s395
    %v397 = vmul.f32 %v311, %v396
    %v398 = vadd.f32 %v394, %v397
    %s399 = sld [smem:[#allocation9 + $0x85]]
    %v400 = vstv %s399
    %v401 = vmul.f32 %v349, %v400
    %v402 = vadd.f32 %v398, %v401
    %s403 = sld [smem:[#allocation11 + $0x1]]
    %v404 = vstv %s403
    %v405 = vadd.f32 %v402, %v404
    %v406 = vmul.f32 %v405, 0.5
    %v407 = vtanh.pop %v406
    %v408 = vmul.f32 %v407, 0.5
    %v409 = vadd.f32 %v408, 0.5
    %s410 = sld [smem:[#allocation9 + $0x100]]
    %v411 = vstv %s410
    %v412 = vmul.f32 %v159, %v411
    %s413 = sld [smem:[#allocation9 + $0x101]]
    %v414 = vstv %s413
    %v415 = vmul.f32 %v197, %v414
    %v416 = vadd.f32 %v412, %v415
    %s417 = sld [smem:[#allocation9 + $0x102]]
    %v418 = vstv %s417
    %v419 = vmul.f32 %v235, %v418
    %v420 = vadd.f32 %v416, %v419
    %s421 = sld [smem:[#allocation9 + $0x103]]
    %v422 = vstv %s421
    %v423 = vmul.f32 %v273, %v422
    %v424 = vadd.f32 %v420, %v423
    %s425 = sld [smem:[#allocation9 + $0x104]]
    %v426 = vstv %s425
    %v427 = vmul.f32 %v311, %v426
    %v428 = vadd.f32 %v424, %v427
    %s429 = sld [smem:[#allocation9 + $0x105]]
    %v430 = vstv %s429
    %v431 = vmul.f32 %v349, %v430
    %v432 = vadd.f32 %v428, %v431
    %s433 = sld [smem:[#allocation11 + $0x2]]
    %v434 = vstv %s433
    %v435 = vadd.f32 %v432, %v434
    %v436 = vmul.f32 %v435, 0.5
    %v437 = vtanh.pop %v436
    %v438 = vmul.f32 %v437, 0.5
    %v439 = vadd.f32 %v438, 0.5
    %s440 = sld [smem:[#allocation9 + $0x180]]
    %v441 = vstv %s440
    %v442 = vmul.f32 %v159, %v441
    %s443 = sld [smem:[#allocation9 + $0x181]]
    %v444 = vstv %s443
    %v445 = vmul.f32 %v197, %v444
    %v446 = vadd.f32 %v442, %v445
    %s447 = sld [smem:[#allocation9 + $0x182]]
    %v448 = vstv %s447
    %v449 = vmul.f32 %v235, %v448
    %v450 = vadd.f32 %v446, %v449
    %s451 = sld [smem:[#allocation9 + $0x183]]
    %v452 = vstv %s451
    %v453 = vmul.f32 %v273, %v452
    %v454 = vadd.f32 %v450, %v453
    %s455 = sld [smem:[#allocation9 + $0x184]]
    %v456 = vstv %s455
    %v457 = vmul.f32 %v311, %v456
    %v458 = vadd.f32 %v454, %v457
    %s459 = sld [smem:[#allocation9 + $0x185]]
    %v460 = vstv %s459
    %v461 = vmul.f32 %v349, %v460
    %v462 = vadd.f32 %v458, %v461
    %s463 = sld [smem:[#allocation11 + $0x3]]
    %v464 = vstv %s463
    %v465 = vadd.f32 %v462, %v464
    %v466 = vmul.f32 %v465, 0.5
    %v467 = vtanh.pop %v466
    %v468 = vmul.f32 %v467, 0.5
    %v469 = vadd.f32 %v468, 0.5
    %s470 = sld [smem:[#allocation12]]
    %v471 = vstv %s470
    %v472 = vmul.f32 %v379, %v471
    %s473 = sld [smem:[#allocation12 + $0x1]]
    %v474 = vstv %s473
    %v475 = vmul.f32 %v409, %v474
    %v476 = vadd.f32 %v472, %v475
    %s477 = sld [smem:[#allocation12 + $0x2]]
    %v478 = vstv %s477
    %v479 = vmul.f32 %v439, %v478
    %v480 = vadd.f32 %v476, %v479
    %s481 = sld [smem:[#allocation12 + $0x3]]
    %v482 = vstv %s481
    %v483 = vmul.f32 %v469, %v482
    %v484 = vadd.f32 %v480, %v483
    %s485 = sld [smem:[#allocation2]]
    %v486 = vstv %s485
    %v487 = vadd.f32 %v484, %v486
    %v488 = vmul.f32 %v487, 0.5
    %v489 = vtanh.pop %v488
    %v490 = vmul.f32 %v489, 0.5
    %v491 = vadd.f32 %v490, 0.5
    %492 = vst [vmem:[#allocation15] sm:$0xff] %v491
    // Predicated region
    $region54: #{tpu_custom_call.1} parent=1 // pred_check
      _
    $region55: #{tpu_custom_call.1} parent=1 // pred_check_branch
      %494 = sbr.rel (0) target = $region57
    $region56: #{tpu_custom_call.1} parent=1 // pred_region
      %s496 = ssub.s32 128, 128
      %497 = vsyncadd [#allocation5], %s496
      %s499 = sshll.u32 [#allocation15], 4
      %s500 = int_to_ptr.vmem [resolvable:$true] %s499
      %502 = dma.vmem_to_hbm [thread:$0]  %s500, 128, %s7, [#allocation5]
    $region57: #{tpu_custom_call.1} parent=1 // pred_fallthru
      _
    // Predicated region
    $region58: #{tpu_custom_call.1} parent=1 // pred_check
      _
    $region59: #{tpu_custom_call.1} parent=1 // pred_check_branch
      %504 = sbr.rel (0) target = $region61
    $region60: #{tpu_custom_call.1} parent=1 // pred_region
      %505 = dma.done [#allocation5], 128
    $region61: #{tpu_custom_call.1} parent=1 // pred_fallthru
      _
    %506 = vsyncpa [#allocation4], 1
    %507 = vsyncpa [#allocation5], 1
    %508 = vsyncpa [#allocation6], 1
    %509 = vsyncpa [#allocation7], 1
    %510 = vsyncpa [#allocation10], 1
    %511 = vsyncpa [#allocation13], 1

</llo_original>
